<compile_context>
chip_gen: v7x
topology: tpu7x:2x2x1
jax: 0.10.0
libtpu: 0.0.40
codegen_flags: <defaults>
</compile_context>

<pallas_src>
import jax
import jax.numpy as jnp
from jax.experimental import pallas as pl
from jax.experimental.pallas import tpu as pltpu


def _cdiv(a: int, b: int) -> int:
    return -(-a // b)


def _round_up(x: int, m: int) -> int:
    return ((x + m - 1) // m) * m


def _vmem_capacity_bytes() -> int:
    """Per-core VMEM capacity; falls back to the smallest listed generation (v7x, 64 MiB)."""
    try:
        return int(pltpu.get_tpu_info().vmem_capacity_bytes)
    except Exception:
        return 64 * 1024 * 1024


def _choose_tile_rows(n: int, h: int, in_itemsize: int, w_resident_bytes: int,
                      pipeline_budget_bytes: int, target_rows: int) -> int:
    """Row tile (multiple of 128): big, VMEM-budgeted, but with enough grid steps to pipeline."""
    n_row_blocks = _cdiv(n, 128)
    # VMEM per tile row: x_i and x_j double-buffered (2 inputs x 2 buffers x itemsize)
    # plus f32 intermediates y, z (compiler scratch) plus the (tm, 1) output.
    bytes_per_row = h * (4 * in_itemsize + 8) + 16
    avail = max(pipeline_budget_bytes - w_resident_bytes, 128 * bytes_per_row)
    cap_units = max(1, (avail // bytes_per_row) // 128)
    tm_units = max(1, min(cap_units, max(1, target_rows // 128), n_row_blocks))

    # Mem-bound kernel: keep >= 8 grid steps (>= 4 per v7x TensorCore) when N allows, so the
    # BlockSpec prefetch/writeback pipeline has work to overlap. 256-512-row tiles already sit
    # at 63-85% of the HBM roofline, so shrinking tm to get more steps loses little.
    min_steps = min(8, n_row_blocks)
    while tm_units > 1 and _cdiv(n_row_blocks, tm_units) < min_steps:
        tm_units -= 1

    # v7x shards the "parallel" row axis across 2 TensorCores: prefer an even step count so
    # neither core idles on the last step (harmless on single-TC v5e/v6e).
    if (tm_units > 1
            and _cdiv(n_row_blocks, tm_units) % 2 == 1
            and _cdiv(n_row_blocks, tm_units - 1) % 2 == 0):
        tm_units -= 1

    tm = tm_units * 128
    # Never request a block taller than the (8-row-aligned) array itself.
    return min(tm, _round_up(n, 8))


def bilinear_kernel(xi_ref, xj_ref, w_ref, o_ref):
    # xi_ref / xj_ref: (tm, H) row tiles;  w_ref: (H, H) resident weight (torch [out, in] layout);
    # o_ref: (tm, 1) per-row scores.
    xi = xi_ref[...]
    xj = xj_ref[...]
    w = w_ref[...]

    # sum((x_i @ W^T) * x_j, -1) == sum(x_i * (x_j @ W), -1): no in-kernel transpose of W.
    y = jnp.dot(xj, w, preferred_element_type=jnp.float32)   # MXU, f32 accumulate
    z = xi.astype(jnp.float32) * y                            # VPU in f32 (v5e-safe)
    # Plain lane-axis reduction (XLU slot) into a (tm, 1) column; output bytes are negligible,
    # so no MXU/transpose tricks for the store.
    o_ref[...] = jnp.sum(z, axis=-1, keepdims=True)


def bilinear_predictor(x_i, x_j, w):
    """x_i, x_j: [N, H]; w: [H, H] in torch nn.Linear ([out, in]) layout. Returns f32 scores [N]."""
    N, H = x_i.shape
    assert x_j.shape == (N, H) and w.shape == (H, H)
    in_itemsize = jnp.dtype(x_i.dtype).itemsize
    w_itemsize = jnp.dtype(w.dtype).itemsize

    # Generation-aware VMEM budgeting: v5e/v6e have 128 MiB VMEM -> 64 MiB scoped limit and
    # 1024-row target tiles; v7x has 64 MiB -> 32 MiB limit and 512-row target tiles.
    vmem_cap = _vmem_capacity_bytes()
    vmem_limit = min(vmem_cap // 2, 96 * 1024 * 1024)
    target_rows = 1024 if vmem_cap >= 128 * 1024 * 1024 else 512
    pipeline_budget = (vmem_limit * 3) // 4                   # headroom for compiler scratch
    w_resident_bytes = 2 * H * H * w_itemsize                 # W is double-buffered by BlockSpec
    tm = _choose_tile_rows(N, H, in_itemsize, w_resident_bytes, pipeline_budget, target_rows)

    grid = (pl.cdiv(N, tm),)
    flops = 2 * N * H * H + 2 * N * H                         # main matmul + mul/reduce
    bytes_accessed = 2 * N * H * in_itemsize + H * H * w_itemsize + N * 4

    out = pl.pallas_call(
        bilinear_kernel,
        out_shape=jax.ShapeDtypeStruct((N, 1), jnp.float32),
        grid_spec=pltpu.PrefetchScalarGridSpec(
            num_scalar_prefetch=0,
            grid=grid,
            in_specs=[
                pl.BlockSpec((tm, H), lambda i: (i, 0)),      # x_i row tile (full natural H)
                pl.BlockSpec((tm, H), lambda i: (i, 0)),      # x_j row tile
                pl.BlockSpec((H, H), lambda i: (0, 0)),       # full weight, resident across grid
            ],
            out_specs=pl.BlockSpec((tm, 1), lambda i: (i, 0)),
        ),
        compiler_params=pltpu.CompilerParams(
            dimension_semantics=("parallel",),                # row-parallel; shards v7x's 2 TCs
            vmem_limit_bytes=vmem_limit,
        ),
        cost_estimate=pl.CostEstimate(
            flops=flops, transcendentals=0, bytes_accessed=bytes_accessed),
    )(x_i, x_j, w)

    return out[:, 0]


if __name__ == "__main__":
    key = jax.random.PRNGKey(0)
    # Small shapes; N is intentionally NOT a tile multiple and H < 128 to exercise the
    # partial-last-block and natural-H (no padding) paths.
    N, H = 200, 32

    k1, k2, k3 = jax.random.split(key, 3)
    x_i = jax.random.normal(k1, (N, H), dtype=jnp.float32)
    x_j = jax.random.normal(k2, (N, H), dtype=jnp.float32)
    bound = 1.0 / (H ** 0.5)   # torch.nn.Linear default init range
    w = jax.random.uniform(k3, (H, H), dtype=jnp.float32, minval=-bound, maxval=bound)

    # f32 path
    out = jax.block_until_ready(bilinear_predictor(x_i, x_j, w))
    ref = jnp.sum((x_i @ w.T) * x_j, axis=-1)
    assert out.shape == (N,)
    assert jnp.allclose(out, ref, atol=1e-4, rtol=1e-4), "f32 mismatch vs reference"

    # bf16 streaming path (half the HBM bytes; accumulation stays f32 in-kernel).
    # Note: the kernel does the matmul natively in bf16 on the MXU while this reference upcasts
    # first, so results differ at ~1e-2 level — covered by the tolerance.
    x_i16 = x_i.astype(jnp.bfloat16)
    x_j16 = x_j.astype(jnp.bfloat16)
    w16 = w.astype(jnp.bfloat16)
    out16 = jax.block_until_ready(bilinear_predictor(x_i16, x_j16, w16))
    ref16 = jnp.sum((x_i16.astype(jnp.float32) @ w16.astype(jnp.float32).T)
                    * x_j16.astype(jnp.float32), axis=-1)
    assert out16.shape == (N,)
    assert jnp.allclose(out16, ref16, atol=2e-2, rtol=2e-2), "bf16 mismatch vs reference"

    print("KERNEL_OK")
</pallas_src>

<mosaic_0001>
module attributes {stable_mosaic.version = 11 : i64} {
  func.func @bilinear_kernel(%arg0: i32, %arg1: memref<128x32xf32, #tpu.memory_space<vmem>>, %arg2: memref<128x32xf32, #tpu.memory_space<vmem>>, %arg3: memref<32x32xf32, #tpu.memory_space<vmem>>, %arg4: memref<128x1xf32, #tpu.memory_space<vmem>>) attributes {dimension_semantics = [#tpu.dimension_semantics<parallel>], iteration_bounds = array<i64: 2>, scalar_prefetch = 0 : i64, scratch_operands = 0 : i64, tpu.core_type = #tpu.core_type<tc>, window_params = [{transform_indices = @transform_0, window_bounds = array<i64: 128, 32>}, {transform_indices = @transform_1, window_bounds = array<i64: 128, 32>}, {pipeline_mode = #tpu.pipeline_mode<synchronous>, transform_indices = @transform_2, window_bounds = array<i64: 32, 32>}, {transform_indices = @transform_3, window_bounds = array<i64: 128, 1>}]} {
    %c0 = arith.constant 0 : index
    %c0_0 = arith.constant 0 : index
    %0 = vector.load %arg1[%c0, %c0_0] : memref<128x32xf32, #tpu.memory_space<vmem>>, vector<128x32xf32>
    %c0_1 = arith.constant 0 : index
    %c0_2 = arith.constant 0 : index
    %1 = vector.load %arg2[%c0_1, %c0_2] : memref<128x32xf32, #tpu.memory_space<vmem>>, vector<128x32xf32>
    %c0_3 = arith.constant 0 : index
    %c0_4 = arith.constant 0 : index
    %2 = vector.load %arg3[%c0_3, %c0_4] : memref<32x32xf32, #tpu.memory_space<vmem>>, vector<32x32xf32>
    %cst = arith.constant dense<0.000000e+00> : vector<128x32xf32>
    %3 = tpu.matmul %1, %2, %cst {dimension_numbers = #tpu.dot_dimension_numbers<[1], [0], [0], [1], [0, 0, 1, 1], [], []>} : vector<128x32xf32>, vector<32x32xf32>, vector<128x32xf32> -> vector<128x32xf32>
    %4 = arith.mulf %0, %3 : vector<128x32xf32>
    %cst_5 = arith.constant dense<0.000000e+00> : vector<128xf32>
    %5 = vector.multi_reduction <add>, %4, %cst_5 [1] : vector<128x32xf32> to vector<128xf32>
    %6 = vector.shape_cast %5 : vector<128xf32> to vector<128x1xf32>
    %c0_6 = arith.constant 0 : index
    %c0_7 = arith.constant 0 : index
    %7 = vector.load %arg4[%c0_6, %c0_7] : memref<128x1xf32, #tpu.memory_space<vmem>>, vector<128x1xf32>
    tpu.vector_store %arg4[%c0_6, %c0_7], %6 {strides = array<i32>} : memref<128x1xf32, #tpu.memory_space<vmem>>, vector<128x1xf32>,
    return
  }
  func.func @transform_0(%arg0: i32) -> (i32, i32) {
    %c0_i32 = arith.constant 0 : i32
    %c0_i32_0 = arith.constant 0 : i32
    return %arg0, %c0_i32 : i32, i32
  }
  func.func @transform_1(%arg0: i32) -> (i32, i32) {
    %c0_i32 = arith.constant 0 : i32
    %c0_i32_0 = arith.constant 0 : i32
    return %arg0, %c0_i32 : i32, i32
  }
  func.func @transform_2(%arg0: i32) -> (i32, i32) {
    %c0_i32 = arith.constant 0 : i32
    %c0_i32_0 = arith.constant 0 : i32
    %c0_i32_1 = arith.constant 0 : i32
    return %c0_i32, %c0_i32_0 : i32, i32
  }
  func.func @transform_3(%arg0: i32) -> (i32, i32) {
    %c0_i32 = arith.constant 0 : i32
    %c0_i32_0 = arith.constant 0 : i32
    return %arg0, %c0_i32 : i32, i32
  }
}

</mosaic_0001>

<llo_original>
// kernel: tpu_custom_call.1
$region0: #{tpu_custom_call.1}
  #allocation0 [shape = 'u32[]', space=smem, size = 0x4, offset = 0x4, fixed_abs, tag = 'smem constant byte address 0x4 - core index']
  #allocation1 [shape = 'u32[144,128]{1,0:T(1,128)}', space=vmem, size = 0x12000, scoped, tag = 'internal scratch']
  %s0 = inlined_call_operand.vmem [shape: f32[200,32], index: 0, kind: input, shape index: {}]
  %s1 = inlined_call_operand.vmem [shape: f32[200,32], index: 1, kind: input, shape index: {}]
  %s2 = inlined_call_operand.vmem [shape: f32[32,32], index: 2, kind: input, shape index: {}]
  %s3 = inlined_call_operand.vmem [shape: f32[200,1], index: 3, kind: output, shape index: {}]
  %s4 = sld [smem:[#allocation0]]
  $region93: #{tpu_custom_call.1} parent=0
    _
  %s6 = ssub.s32 1, %s4
  %s7 = scalar_select 0, %s6, %s4
  $region1: #{tpu_custom_call.1} parent=0
    #allocation2 [shape = 'u8[131072]{0}', space=vmem, size = 0x20000, scoped, tag = 'output window, operand 0']
    loop: start=0, step=1, limit=4
    $region2: #{tpu_custom_call.1} parent=1 // loop_pre_header
      _
    $region3: #{tpu_custom_call.1} parent=1 // loop_header
      %s9 = sphi 0, %s13
      %p10 = scmp.ge.s32.totalorder %s9, 4
      %s19 = sphi 0, %s21
      %s22 = sphi 0, %s19
      %s23 = sphi 0, %s22
      %s39 = sphi 0, %s23
      %s45 = sphi 0, %s47
      %s48 = sphi 0, %s45
      %s49 = sphi 0, %s48
      %s65 = sphi 0, %s49
      %s69 = sphi 0, %s69
      %s71 = sphi 0, %s69
      %s72 = sphi 0, %s71
      %s86 = sphi 0, %s72
      %s92 = sphi 0, %s94
      %s95 = sphi 0, %s92
      %s96 = sphi 0, %s95
      %s112 = sphi 0, %s96
    $region4: #{tpu_custom_call.1} parent=1 // loop_header_branch
      %12 = sbr.rel (%p10) target = $region8
    $region5: #{tpu_custom_call.1} parent=1 // loop_body
      %s14 = ssub.s32 %s9, 1
      %s15 = ssub.s32 %s9, 2
      %s16 = sadd.s32 %s9, 1
      %s17 = ssub.s32 %s9, %s16
      %p18 = scmp.eq.s32.totalorder %s17, 0
      %s20 = sadd.s32 %s19, 1
      %s21 = scalar_select %p18, %s19, %s20
      %p24 = pneg %p18
      %p25 = scmp.eq.s32.totalorder %s9, 1
      %p26 = por %p24, %p25
      %p27 = scmp.ne.s32.totalorder %s19, %s22
      %p28 = scmp.eq.s32.totalorder %s9, 0
      %p29 = por %p27, %p28
      %p30 = scmp.ne.s32.totalorder %s19, %s22
      %p31 = scmp.eq.s32.totalorder %s14, 1
      %p32 = por %p30, %p31
      %p33 = scmp.ne.s32.totalorder %s22, %s23
      %p34 = scmp.eq.s32.totalorder %s14, 0
      %p35 = por %p33, %p34
      %p36 = scmp.ne.s32.totalorder %s22, %s23
      %p37 = scmp.eq.s32.totalorder %s15, 1
      %p38 = por %p36, %p37
      %p40 = scmp.ne.s32.totalorder %s23, %s39
      %p41 = scmp.eq.s32.totalorder %s15, 0
      %p42 = por %p40, %p41
      %s43 = ssub.s32 %s9, %s16
      %p44 = scmp.eq.s32.totalorder %s43, 0
      %s46 = sadd.s32 %s45, 1
      %s47 = scalar_select %p44, %s45, %s46
      %p50 = pneg %p44
      %p51 = scmp.eq.s32.totalorder %s9, 1
      %p52 = por %p50, %p51
      %p53 = scmp.ne.s32.totalorder %s45, %s48
      %p54 = scmp.eq.s32.totalorder %s9, 0
      %p55 = por %p53, %p54
      %p56 = scmp.ne.s32.totalorder %s45, %s48
      %p57 = scmp.eq.s32.totalorder %s14, 1
      %p58 = por %p56, %p57
      %p59 = scmp.ne.s32.totalorder %s48, %s49
      %p60 = scmp.eq.s32.totalorder %s14, 0
      %p61 = por %p59, %p60
      %p62 = scmp.ne.s32.totalorder %s48, %s49
      %p63 = scmp.eq.s32.totalorder %s15, 1
      %p64 = por %p62, %p63
      %p66 = scmp.ne.s32.totalorder %s49, %s65
      %p67 = scmp.eq.s32.totalorder %s15, 0
      %p68 = por %p66, %p67
      %s70 = sadd.s32 %s69, 1
      %p73 = scmp.eq.s32.totalorder %s9, 1
      %p74 = scmp.ne.s32.totalorder %s69, %s71
      %p75 = scmp.eq.s32.totalorder %s9, 0
      %p76 = por %p74, %p75
      %p77 = scmp.ne.s32.totalorder %s69, %s71
      %p78 = scmp.eq.s32.totalorder %s14, 1
      %p79 = por %p77, %p78
      %p80 = scmp.ne.s32.totalorder %s71, %s72
      %p81 = scmp.eq.s32.totalorder %s14, 0
      %p82 = por %p80, %p81
      %p83 = scmp.ne.s32.totalorder %s71, %s72
      %p84 = scmp.eq.s32.totalorder %s15, 1
      %p85 = por %p83, %p84
      %p87 = scmp.ne.s32.totalorder %s72, %s86
      %p88 = scmp.eq.s32.totalorder %s15, 0
      %p89 = por %p87, %p88
      %s90 = ssub.s32 %s9, %s16
      %p91 = scmp.eq.s32.totalorder %s90, 0
      %s93 = sadd.s32 %s92, 1
      %s94 = scalar_select %p91, %s92, %s93
      %p97 = pneg %p91
      %p98 = scmp.eq.s32.totalorder %s9, 1
      %p99 = por %p97, %p98
      %p100 = scmp.ne.s32.totalorder %s92, %s95
      %p101 = scmp.eq.s32.totalorder %s9, 0
      %p102 = por %p100, %p101
      %p103 = scmp.ne.s32.totalorder %s92, %s95
      %p104 = scmp.eq.s32.totalorder %s14, 1
      %p105 = por %p103, %p104
      %p106 = scmp.ne.s32.totalorder %s95, %s96
      %p107 = scmp.eq.s32.totalorder %s14, 0
      %p108 = por %p106, %p107
      %p109 = scmp.ne.s32.totalorder %s95, %s96
      %p110 = scmp.eq.s32.totalorder %s15, 1
      %p111 = por %p109, %p110
      %p113 = scmp.ne.s32.totalorder %s96, %s112
      %p114 = scmp.eq.s32.totalorder %s15, 0
      %p115 = por %p113, %p114
      %p116 = scmp.le.s32.totalorder 1, %s9
      %p117 = scmp.lt.s32.totalorder %s9, 3
      %p118 = pnand %p116, %p117
      %p119 = pneg %p118
      // Predicated region
      $region9: #{tpu_custom_call.1} parent=5 // pred_check
        _
      $region10: #{tpu_custom_call.1} parent=5 // pred_check_branch
        %121 = sbr.rel (%p118) target = $region12
      $region11: #{tpu_custom_call.1} parent=5 // pred_region
        %s122 = ssub.s32 %s9, 1
        // Predicated region
        $region13: #{tpu_custom_call.1} parent=11 // pred_check
          %p123 = pneg %p82
        $region14: #{tpu_custom_call.1} parent=11 // pred_check_branch
          %125 = sbr.rel (%p123) target = $region16
        $region15: #{tpu_custom_call.1} parent=11 // pred_region
          _
        $region16: #{tpu_custom_call.1} parent=11 // pred_fallthru
          _
      $region12: #{tpu_custom_call.1} parent=5 // pred_fallthru
        _
      %p126 = scmp.lt.s32.totalorder %s9, 2
      // Predicated region
      $region17: #{tpu_custom_call.1} parent=5 // pred_check
        %p127 = pneg %p126
      $region18: #{tpu_custom_call.1} parent=5 // pred_check_branch
        %129 = sbr.rel (%p127) target = $region20
      $region19: #{tpu_custom_call.1} parent=5 // pred_region
        // Predicated region
        $region21: #{tpu_custom_call.1} parent=19 // pred_check
          %p130 = pneg %p29
        $region22: #{tpu_custom_call.1} parent=19 // pred_check_branch
          %132 = sbr.rel (%p130) target = $region24
        $region23: #{tpu_custom_call.1} parent=19 // pred_region
          %s133 = smul.u32 16, %s9
          %s134 = ssub.s32 25, %s133
          %p135 = scmp.lt.s32.totalorder %s134, 16
          %s136 = scalar_select %p135, %s134, 16
          %s137 = smul.u32 128, %s136
          %p138 = scmp.lt.s32.totalorder %s133, 24
          %s139 = scalar_select %p138, %s133, 24
          %s140 = smul.addr %s139, 8
          %s141 = scalar_lea.vmem %s0, %s140
          %s142 = smul.u32 16, %s9
          %s143 = ssub.s32 25, %s142
          %p144 = scmp.lt.s32.totalorder %s143, 16
          %s145 = scalar_select %p144, %s143, 16
          %s146 = smul.u32 128, %s145
        $region24: #{tpu_custom_call.1} parent=19 // pred_fallthru
          _
        // Predicated region
        $region25: #{tpu_custom_call.1} parent=19 // pred_check
          %p147 = pneg %p55
        $region26: #{tpu_custom_call.1} parent=19 // pred_check_branch
          %149 = sbr.rel (%p147) target = $region28
        $region27: #{tpu_custom_call.1} parent=19 // pred_region
          %s150 = smul.u32 16, %s9
          %s151 = ssub.s32 25, %s150
          %p152 = scmp.lt.s32.totalorder %s151, 16
          %s153 = scalar_select %p152, %s151, 16
          %s154 = smul.u32 128, %s153
          %p155 = scmp.lt.s32.totalorder %s150, 24
          %s156 = scalar_select %p155, %s150, 24
          %s157 = smul.addr %s156, 8
          %s158 = scalar_lea.vmem %s1, %s157
          %s159 = smul.u32 16, %s9
          %s160 = ssub.s32 25, %s159
          %p161 = scmp.lt.s32.totalorder %s160, 16
          %s162 = scalar_select %p161, %s160, 16
          %s163 = smul.u32 128, %s162
        $region28: #{tpu_custom_call.1} parent=19 // pred_fallthru
          _
      $region20: #{tpu_custom_call.1} parent=5 // pred_fallthru
        _
      %p164 = scmp.le.s32.totalorder 1, %s9
      %p165 = scmp.lt.s32.totalorder %s9, 3
      %p166 = pnand %p164, %p165
      %p167 = pneg %p166
      // Predicated region
      $region29: #{tpu_custom_call.1} parent=5 // pred_check
        _
      $region30: #{tpu_custom_call.1} parent=5 // pred_check_branch
        %169 = sbr.rel (%p166) target = $region32
      $region31: #{tpu_custom_call.1} parent=5 // pred_region
        %s170 = ssub.s32 %s9, 1
        %s171 = smul.u32 16, %s14
        %s172 = ssub.s32 25, %s171
        %p173 = scmp.lt.s32.totalorder %s172, 16
        %s174 = scalar_select %p173, %s172, 16
        %s175 = smul.u32 128, %s174
        %p176 = scmp.lt.s32.totalorder %s171, 24
        %s177 = scalar_select %p176, %s171, 24
        %s178 = smul.addr %s177, 8
        %s179 = scalar_lea.vmem %s0, %s178
        %p180 = pneg %p35
        %p181 = pneg %p32
        %s182 = smul.u32 16, %s14
        %s183 = ssub.s32 25, %s182
        %p184 = scmp.lt.s32.totalorder %s183, 16
        %s185 = scalar_select %p184, %s183, 16
        %s186 = smul.u32 128, %s185
        %p187 = scmp.lt.s32.totalorder %s182, 24
        %s188 = scalar_select %p187, %s182, 24
        %s189 = smul.addr %s188, 8
        %s190 = scalar_lea.vmem %s1, %s189
        %p191 = pneg %p61
        %p192 = pneg %p58
        %p193 = pneg %p82
        %p194 = pneg %p79
        %p195 = pneg %p108
        %p196 = pneg %p105
        %s197 = sand.u32 %s95, 1
        %s198 = sand.u32 %s95, 1
        %s199 = smul.addr %s198, 128
        %s200 = scalar_lea.vmem [#allocation2], %s199
        %s201 = smul.u32 16, %s14
        %s202 = ssub.s32 25, %s201
        %p203 = scmp.lt.s32.totalorder %s202, 16
        %s204 = scalar_select %p203, %s202, 16
        %s205 = smul.u32 128, %s204
        %p206 = scmp.lt.s32.totalorder %s201, 24
        %s207 = scalar_select %p206, %s201, 24
        %s208 = smul.addr %s207, 8
        %s209 = scalar_lea.vmem %s0, %s208
        %s210 = smul.u32 16, %s14
        %s211 = ssub.s32 25, %s210
        %p212 = scmp.lt.s32.totalorder %s211, 16
        %s213 = scalar_select %p212, %s211, 16
        %s214 = smul.u32 128, %s213
        %s215 = smul.u32 16, %s14
        %s216 = ssub.s32 25, %s215
        %p217 = scmp.lt.s32.totalorder %s216, 16
        %s218 = scalar_select %p217, %s216, 16
        %s219 = smul.u32 128, %s218
        %p220 = scmp.lt.s32.totalorder %s215, 24
        %s221 = scalar_select %p220, %s215, 24
        %s222 = smul.addr %s221, 8
        %s223 = scalar_lea.vmem %s1, %s222
        %s224 = smul.u32 16, %s14
        %s225 = ssub.s32 25, %s224
        %p226 = scmp.lt.s32.totalorder %s225, 16
        %s227 = scalar_select %p226, %s225, 16
        %s228 = smul.u32 128, %s227
        %s229 = smul.u32 16, %s14
        %s230 = ssub.s32 25, %s229
        %p231 = scmp.lt.s32.totalorder %s230, 16
        %s232 = scalar_select %p231, %s230, 16
        %s233 = smul.u32 128, %s232
        %v234 = vld [vmem:[%s209] sm:$0xff]
        %v235 = vld [vmem:[%s209 + $0x8] sm:$0xff]
        %v236 = vld [vmem:[%s209 + $0x10] sm:$0xff]
        %v237 = vld [vmem:[%s209 + $0x18] sm:$0xff]
        %v238 = vld [vmem:[%s209 + $0x20] sm:$0xff]
        %v239 = vld [vmem:[%s209 + $0x28] sm:$0xff]
        %v240 = vld [vmem:[%s209 + $0x30] sm:$0xff]
        %v241 = vld [vmem:[%s209 + $0x38] sm:$0xff]
        %v242 = vld [vmem:[%s209 + $0x40] sm:$0xff]
        %v243 = vld [vmem:[%s209 + $0x48] sm:$0xff]
        %v244 = vld [vmem:[%s209 + $0x50] sm:$0xff]
        %v245 = vld [vmem:[%s209 + $0x58] sm:$0xff]
        %v246 = vld [vmem:[%s209 + $0x60] sm:$0xff]
        %v247 = vld [vmem:[%s209 + $0x68] sm:$0xff]
        %v248 = vld [vmem:[%s209 + $0x70] sm:$0xff]
        %v249 = vld [vmem:[%s209 + $0x78] sm:$0xff]
        %v250 = vld [vmem:[%s223] sm:$0xff]
        %v251 = vld [vmem:[%s223 + $0x8] sm:$0xff]
        %v252 = vld [vmem:[%s223 + $0x10] sm:$0xff]
        %v253 = vld [vmem:[%s223 + $0x18] sm:$0xff]
        %v254 = vld [vmem:[%s223 + $0x20] sm:$0xff]
        %v255 = vld [vmem:[%s223 + $0x28] sm:$0xff]
        %v256 = vld [vmem:[%s223 + $0x30] sm:$0xff]
        %v257 = vld [vmem:[%s223 + $0x38] sm:$0xff]
        %v258 = vld [vmem:[%s223 + $0x40] sm:$0xff]
        %v259 = vld [vmem:[%s223 + $0x48] sm:$0xff]
        %v260 = vld [vmem:[%s223 + $0x50] sm:$0xff]
        %v261 = vld [vmem:[%s223 + $0x58] sm:$0xff]
        %v262 = vld [vmem:[%s223 + $0x60] sm:$0xff]
        %v263 = vld [vmem:[%s223 + $0x68] sm:$0xff]
        %v264 = vld [vmem:[%s223 + $0x70] sm:$0xff]
        %v265 = vld [vmem:[%s223 + $0x78] sm:$0xff]
        %v266 = vld [vmem:[%s2] sm:$0xff]
        %v267 = vld [vmem:[%s2 + $0x8] sm:$0xff]
        %v268 = vld [vmem:[%s2 + $0x10] sm:$0xff]
        %v269 = vld [vmem:[%s2 + $0x18] sm:$0xff]
        %vm270 = vcmask 261120
        %v272 = vsel %vm270, %v250, 0
        %v275 = vsel %vm270, %v251, 0
        %v278 = vsel %vm270, %v252, 0
        %v281 = vsel %vm270, %v253, 0
        %v284 = vsel %vm270, %v254, 0
        %v287 = vsel %vm270, %v255, 0
        %v290 = vsel %vm270, %v256, 0
        %v293 = vsel %vm270, %v257, 0
        %v296 = vsel %vm270, %v258, 0
        %v299 = vsel %vm270, %v259, 0
        %v302 = vsel %vm270, %v260, 0
        %v305 = vsel %vm270, %v261, 0
        %v308 = vsel %vm270, %v262, 0
        %v311 = vsel %vm270, %v263, 0
        %v314 = vsel %vm270, %v264, 0
        %v317 = vsel %vm270, %v265, 0
        %319 = vmatprep.subr.mxu0 0.0
        %320 = vmatpush1.msra.mxu0 %v266
        %321 = vmatprep.subr.mxu0 0.0
        %322 = vmatpush1.msra.mxu0 %v267
        %323 = vmatprep.subr.mxu0 0.0
        %324 = vmatpush1.msra.mxu0 %v268
        %325 = vmatprep.subr.mxu0 0.0
        %326 = vmatpush1.msra.mxu0 %v269
        %327 = vmatprep.subr.mxu0 0.0
        %328 = vmatpush1.msra.mxu0 0.0
        %329 = vmatprep.subr.mxu0 0.0
        %330 = vmatpush1.msra.mxu0 0.0
        %331 = vmatprep.subr.mxu0 0.0
        %332 = vmatpush1.msra.mxu0 0.0
        %333 = vmatprep.subr.mxu0 0.0
        %334 = vmatpush1.msra.mxu0 0.0
        %335 = vmatprep.subr.mxu0 0.0
        %336 = vmatpush1.msra.mxu0 0.0
        %337 = vmatprep.subr.mxu0 0.0
        %338 = vmatpush1.msra.mxu0 0.0
        %339 = vmatprep.subr.mxu0 0.0
        %340 = vmatpush1.msra.mxu0 0.0
        %341 = vmatprep.subr.mxu0 0.0
        %342 = vmatpush1.msra.mxu0 0.0
        %343 = vmatprep.subr.mxu0 0.0
        %344 = vmatpush1.msra.mxu0 0.0
        %345 = vmatprep.subr.mxu0 0.0
        %346 = vmatpush1.msra.mxu0 0.0
        %347 = vmatprep.subr.mxu0 0.0
        %348 = vmatpush1.msra.mxu0 0.0
        %349 = vmatprep.subr.mxu0 0.0
        %350 = vmatpush1.msra.mxu0 0.0
        %351 = vmatprep.subr.mxu0 0.0
        %352 = vmatpush1.msra.mxu0 0.0
        %353 = vmatprep.subr.mxu0 0.0
        %354 = vmatpush1.msra.mxu0 0.0
        %355 = vmatprep.subr.mxu0 0.0
        %356 = vmatpush1.msra.mxu0 0.0
        %357 = vmatprep.subr.mxu0 0.0
        %358 = vmatpush1.msra.mxu0 0.0
        %359 = vmatprep.subr.mxu0 0.0
        %360 = vmatpush1.msra.mxu0 0.0
        %361 = vmatprep.subr.mxu0 0.0
        %362 = vmatpush1.msra.mxu0 0.0
        %363 = vmatprep.subr.mxu0 0.0
        %364 = vmatpush1.msra.mxu0 0.0
        %365 = vmatprep.subr.mxu0 0.0
        %366 = vmatpush1.msra.mxu0 0.0
        %367 = vmatprep.subr.mxu0 0.0
        %368 = vmatpush1.msra.mxu0 0.0
        %369 = vmatprep.subr.mxu0 0.0
        %370 = vmatpush1.msra.mxu0 0.0
        %371 = vmatprep.subr.mxu0 0.0
        %372 = vmatpush1.msra.mxu0 0.0
        %373 = vmatprep.subr.mxu0 0.0
        %374 = vmatpush1.msra.mxu0 0.0
        %375 = vmatprep.subr.mxu0 0.0
        %376 = vmatpush1.msra.mxu0 0.0
        %377 = vmatprep.subr.mxu0 0.0
        %378 = vmatpush1.msra.mxu0 0.0
        %379 = vmatprep.subr.mxu0 0.0
        %380 = vmatpush1.msra.mxu0 0.0
        %381 = vmatprep.subr.mxu0 0.0
        %382 = vmatpush1.msra.mxu0 0.0
        %383 = vmatprep.mubr.f32.mxu0 0.0
        %384 = vmatmul.mubr.f32.gmra.mrb[0].mxu0 %v272
        %v385 = vpop.f32.mrb[0].mxu0
        %v386 = vadd.f32 0.0, %v385
        %v387 = vpop.f32.mrb[0].mxu0
        %388 = vmatprep.mubr.f32.mxu0 0.0
        %389 = vmatmul.mubr.f32.gmra.mrb[0].mxu0 %v275
        %v390 = vpop.f32.mrb[0].mxu0
        %v391 = vadd.f32 0.0, %v390
        %v392 = vpop.f32.mrb[0].mxu0
        %393 = vmatprep.mubr.f32.mxu0 0.0
        %394 = vmatmul.mubr.f32.gmra.mrb[0].mxu0 %v278
        %v395 = vpop.f32.mrb[0].mxu0
        %v396 = vadd.f32 0.0, %v395
        %v397 = vpop.f32.mrb[0].mxu0
        %398 = vmatprep.mubr.f32.mxu0 0.0
        %399 = vmatmul.mubr.f32.gmra.mrb[0].mxu0 %v281
        %v400 = vpop.f32.mrb[0].mxu0
        %v401 = vadd.f32 0.0, %v400
        %v402 = vpop.f32.mrb[0].mxu0
        %403 = vmatprep.mubr.f32.mxu0 0.0
        %404 = vmatmul.mubr.f32.gmra.mrb[0].mxu0 %v284
        %v405 = vpop.f32.mrb[0].mxu0
        %v406 = vadd.f32 0.0, %v405
        %v407 = vpop.f32.mrb[0].mxu0
        %408 = vmatprep.mubr.f32.mxu0 0.0
        %409 = vmatmul.mubr.f32.gmra.mrb[0].mxu0 %v287
        %v410 = vpop.f32.mrb[0].mxu0
        %v411 = vadd.f32 0.0, %v410
        %v412 = vpop.f32.mrb[0].mxu0
        %413 = vmatprep.mubr.f32.mxu0 0.0
        %414 = vmatmul.mubr.f32.gmra.mrb[0].mxu0 %v290
        %v415 = vpop.f32.mrb[0].mxu0
        %v416 = vadd.f32 0.0, %v415
        %v417 = vpop.f32.mrb[0].mxu0
        %418 = vmatprep.mubr.f32.mxu0 0.0
        %419 = vmatmul.mubr.f32.gmra.mrb[0].mxu0 %v293
        %v420 = vpop.f32.mrb[0].mxu0
        %v421 = vadd.f32 0.0, %v420
        %v422 = vpop.f32.mrb[0].mxu0
        %423 = vmatprep.mubr.f32.mxu0 0.0
        %424 = vmatmul.mubr.f32.gmra.mrb[0].mxu0 %v296
        %v425 = vpop.f32.mrb[0].mxu0
        %v426 = vadd.f32 0.0, %v425
        %v427 = vpop.f32.mrb[0].mxu0
        %428 = vmatprep.mubr.f32.mxu0 0.0
        %429 = vmatmul.mubr.f32.gmra.mrb[0].mxu0 %v299
        %v430 = vpop.f32.mrb[0].mxu0
        %v431 = vadd.f32 0.0, %v430
        %v432 = vpop.f32.mrb[0].mxu0
        %433 = vmatprep.mubr.f32.mxu0 0.0
        %434 = vmatmul.mubr.f32.gmra.mrb[0].mxu0 %v302
        %v435 = vpop.f32.mrb[0].mxu0
        %v436 = vadd.f32 0.0, %v435
        %v437 = vpop.f32.mrb[0].mxu0
        %438 = vmatprep.mubr.f32.mxu0 0.0
        %439 = vmatmul.mubr.f32.gmra.mrb[0].mxu0 %v305
        %v440 = vpop.f32.mrb[0].mxu0
        %v441 = vadd.f32 0.0, %v440
        %v442 = vpop.f32.mrb[0].mxu0
        %443 = vmatprep.mubr.f32.mxu0 0.0
        %444 = vmatmul.mubr.f32.gmra.mrb[0].mxu0 %v308
        %v445 = vpop.f32.mrb[0].mxu0
        %v446 = vadd.f32 0.0, %v445
        %v447 = vpop.f32.mrb[0].mxu0
        %448 = vmatprep.mubr.f32.mxu0 0.0
        %449 = vmatmul.mubr.f32.gmra.mrb[0].mxu0 %v311
        %v450 = vpop.f32.mrb[0].mxu0
        %v451 = vadd.f32 0.0, %v450
        %v452 = vpop.f32.mrb[0].mxu0
        %453 = vmatprep.mubr.f32.mxu0 0.0
        %454 = vmatmul.mubr.f32.gmra.mrb[0].mxu0 %v314
        %v455 = vpop.f32.mrb[0].mxu0
        %v456 = vadd.f32 0.0, %v455
        %v457 = vpop.f32.mrb[0].mxu0
        %458 = vmatprep.mubr.f32.mxu0 0.0
        %459 = vmatmul.mubr.f32.gmra.mrb[0].mxu0 %v317
        %v460 = vpop.f32.mrb[0].mxu0
        %v461 = vadd.f32 0.0, %v460
        %v462 = vpop.f32.mrb[0].mxu0
        %463 = vdwg.mxu0
        %v464 = vmul.f32 %v234, %v386
        %v465 = vmul.f32 %v235, %v391
        %v466 = vmul.f32 %v236, %v396
        %v467 = vmul.f32 %v237, %v401
        %v468 = vmul.f32 %v238, %v406
        %v469 = vmul.f32 %v239, %v411
        %v470 = vmul.f32 %v240, %v416
        %v471 = vmul.f32 %v241, %v421
        %v472 = vmul.f32 %v242, %v426
        %v473 = vmul.f32 %v243, %v431
        %v474 = vmul.f32 %v244, %v436
        %v475 = vmul.f32 %v245, %v441
        %v476 = vmul.f32 %v246, %v446
        %v477 = vmul.f32 %v247, %v451
        %v478 = vmul.f32 %v248, %v456
        %v479 = vmul.f32 %v249, %v461
        %v480 = vsel %vm270, %v464, 0.0
        %481 = vadd.xlane.f32.xlu0 %v480
        %v482 = vpop.xlane.xlu0 %481
        %v483 = vsel %vm270, %v465, 0.0
        %484 = vadd.xlane.f32.xlu0 %v483
        %v485 = vpop.xlane.xlu0 %484
        %v486 = vsel %vm270, %v466, 0.0
        %487 = vadd.xlane.f32.xlu0 %v486
        %v488 = vpop.xlane.xlu0 %487
        %v489 = vsel %vm270, %v467, 0.0
        %490 = vadd.xlane.f32.xlu0 %v489
        %v491 = vpop.xlane.xlu0 %490
        %v492 = vsel %vm270, %v468, 0.0
        %493 = vadd.xlane.f32.xlu0 %v492
        %v494 = vpop.xlane.xlu0 %493
        %v495 = vsel %vm270, %v469, 0.0
        %496 = vadd.xlane.f32.xlu0 %v495
        %v497 = vpop.xlane.xlu0 %496
        %v498 = vsel %vm270, %v470, 0.0
        %499 = vadd.xlane.f32.xlu0 %v498
        %v500 = vpop.xlane.xlu0 %499
        %v501 = vsel %vm270, %v471, 0.0
        %502 = vadd.xlane.f32.xlu0 %v501
        %v503 = vpop.xlane.xlu0 %502
        %v504 = vsel %vm270, %v472, 0.0
        %505 = vadd.xlane.f32.xlu0 %v504
        %v506 = vpop.xlane.xlu0 %505
        %v507 = vsel %vm270, %v473, 0.0
        %508 = vadd.xlane.f32.xlu0 %v507
        %v509 = vpop.xlane.xlu0 %508
        %v510 = vsel %vm270, %v474, 0.0
        %511 = vadd.xlane.f32.xlu0 %v510
        %v512 = vpop.xlane.xlu0 %511
        %v513 = vsel %vm270, %v475, 0.0
        %514 = vadd.xlane.f32.xlu0 %v513
        %v515 = vpop.xlane.xlu0 %514
        %v516 = vsel %vm270, %v476, 0.0
        %517 = vadd.xlane.f32.xlu0 %v516
        %v518 = vpop.xlane.xlu0 %517
        %v519 = vsel %vm270, %v477, 0.0
        %520 = vadd.xlane.f32.xlu0 %v519
        %v521 = vpop.xlane.xlu0 %520
        %v522 = vsel %vm270, %v478, 0.0
        %523 = vadd.xlane.f32.xlu0 %v522
        %v524 = vpop.xlane.xlu0 %523
        %v525 = vsel %vm270, %v479, 0.0
        %526 = vadd.xlane.f32.xlu0 %v525
        %v527 = vpop.xlane.xlu0 %526
        %vm528 = vcmask 7168
        %529 = vst.msk [vmem:[%s200] sm:$0xff] %vm528, %v482
        %530 = vst.msk [vmem:[%s200 + $0x8] sm:$0xff] %vm528, %v485
        %531 = vst.msk [vmem:[%s200 + $0x10] sm:$0xff] %vm528, %v488
        %532 = vst.msk [vmem:[%s200 + $0x18] sm:$0xff] %vm528, %v491
        %533 = vst.msk [vmem:[%s200 + $0x20] sm:$0xff] %vm528, %v494
        %534 = vst.msk [vmem:[%s200 + $0x28] sm:$0xff] %vm528, %v497
        %535 = vst.msk [vmem:[%s200 + $0x30] sm:$0xff] %vm528, %v500
        %536 = vst.msk [vmem:[%s200 + $0x38] sm:$0xff] %vm528, %v503
        %537 = vst.msk [vmem:[%s200 + $0x40] sm:$0xff] %vm528, %v506
        %538 = vst.msk [vmem:[%s200 + $0x48] sm:$0xff] %vm528, %v509
        %539 = vst.msk [vmem:[%s200 + $0x50] sm:$0xff] %vm528, %v512
        %540 = vst.msk [vmem:[%s200 + $0x58] sm:$0xff] %vm528, %v515
        %541 = vst.msk [vmem:[%s200 + $0x60] sm:$0xff] %vm528, %v518
        %542 = vst.msk [vmem:[%s200 + $0x68] sm:$0xff] %vm528, %v521
        %543 = vst.msk [vmem:[%s200 + $0x70] sm:$0xff] %vm528, %v524
        %544 = vst.msk [vmem:[%s200 + $0x78] sm:$0xff] %vm528, %v527
        %s545 = sand.u32 %s95, 1
        %s546 = sand.u32 %s95, 1
        %s547 = smul.addr %s546, 128
        %s548 = scalar_lea.vmem [#allocation2], %s547
        // Predicated region
        $region33: #{tpu_custom_call.1} parent=31 // pred_check
          %p549 = pneg %p105
        $region34: #{tpu_custom_call.1} parent=31 // pred_check_branch
          %551 = sbr.rel (%p549) target = $region36
        $region35: #{tpu_custom_call.1} parent=31 // pred_region
          %s552 = smul.u32 16, %s14
          %s553 = ssub.s32 25, %s552
          %p554 = scmp.lt.s32.totalorder %s553, 16
          %s555 = scalar_select %p554, %s553, 16
          %s556 = smul.u32 128, %s555
          %p557 = scmp.ne.s32.totalorder 0, %s556
          %s558 = smul.addr %s552, 8
          %s559 = scalar_lea.vmem %s3, %s558
          // Predicated region
          $region37: #{tpu_custom_call.1} parent=35 // pred_check
            %p560 = pneg %p557
          $region38: #{tpu_custom_call.1} parent=35 // pred_check_branch
            %562 = sbr.rel (%p560) target = $region40
          $region39: #{tpu_custom_call.1} parent=35 // pred_region
            // Predicated region
            $region41: #{tpu_custom_call.1} parent=39 // pred_check
              _
            $region42: #{tpu_custom_call.1} parent=39 // pred_check_branch
              %564 = sbr.rel (0) target = $region44
            $region43: #{tpu_custom_call.1} parent=39 // pred_region
              // Predicated region
              $region63: #{tpu_custom_call.1} parent=43 // pred_check
                _
              $region64: #{tpu_custom_call.1} parent=43 // pred_check_branch
                %643 = sbr.rel (0) target = $region66
              $region65: #{tpu_custom_call.1} parent=43 // pred_region
                %s644 = sshrl.u32 %s555, 4
                // While loop
                $region67: #{tpu_custom_call.1} parent=65 // loop_pre_header
                  _
                $region68: #{tpu_custom_call.1} parent=65 // loop_header
                  %s646 = sphi 0, %s648
                  %p647 = scmp.ge.s32.totalorder %s646, %s644
                  %s651 = sphi 0, %s688
                  %s652 = sphi %s548, %s691
                  %s653 = sphi %s559, %s692
                $region69: #{tpu_custom_call.1} parent=65 // loop_header_branch
                  %650 = sbr.rel (%p647) target = $region73
                $region70: #{tpu_custom_call.1} parent=65 // loop_body
                  %v654 = vld [vmem:[%s652] sm:$0xff]
                  %655 = vst [vmem:[%s653] sm:$0xff] %v654
                  %v656 = vld [vmem:[%s652 + $0x8] sm:$0xff]
                  %657 = vst [vmem:[%s653 + $0x8] sm:$0xff] %v656
                  %v658 = vld [vmem:[%s652 + $0x10] sm:$0xff]
                  %659 = vst [vmem:[%s653 + $0x10] sm:$0xff] %v658
                  %v660 = vld [vmem:[%s652 + $0x18] sm:$0xff]
                  %661 = vst [vmem:[%s653 + $0x18] sm:$0xff] %v660
                  %v662 = vld [vmem:[%s652 + $0x20] sm:$0xff]
                  %663 = vst [vmem:[%s653 + $0x20] sm:$0xff] %v662
                  %v664 = vld [vmem:[%s652 + $0x28] sm:$0xff]
                  %665 = vst [vmem:[%s653 + $0x28] sm:$0xff] %v664
                  %v666 = vld [vmem:[%s652 + $0x30] sm:$0xff]
                  %667 = vst [vmem:[%s653 + $0x30] sm:$0xff] %v666
                  %v668 = vld [vmem:[%s652 + $0x38] sm:$0xff]
                  %669 = vst [vmem:[%s653 + $0x38] sm:$0xff] %v668
                  %v670 = vld [vmem:[%s652 + $0x40] sm:$0xff]
                  %671 = vst [vmem:[%s653 + $0x40] sm:$0xff] %v670
                  %v672 = vld [vmem:[%s652 + $0x48] sm:$0xff]
                  %673 = vst [vmem:[%s653 + $0x48] sm:$0xff] %v672
                  %v674 = vld [vmem:[%s652 + $0x50] sm:$0xff]
                  %675 = vst [vmem:[%s653 + $0x50] sm:$0xff] %v674
                  %v676 = vld [vmem:[%s652 + $0x58] sm:$0xff]
                  %677 = vst [vmem:[%s653 + $0x58] sm:$0xff] %v676
                  %v678 = vld [vmem:[%s652 + $0x60] sm:$0xff]
                  %679 = vst [vmem:[%s653 + $0x60] sm:$0xff] %v678
                  %v680 = vld [vmem:[%s652 + $0x68] sm:$0xff]
                  %681 = vst [vmem:[%s653 + $0x68] sm:$0xff] %v680
                  %v682 = vld [vmem:[%s652 + $0x70] sm:$0xff]
                  %683 = vst [vmem:[%s653 + $0x70] sm:$0xff] %v682
                  %v684 = vld [vmem:[%s652 + $0x78] sm:$0xff]
                  %685 = vst [vmem:[%s653 + $0x78] sm:$0xff] %v684
                  %s686 = sadd.s32 1, %s651
                  %p687 = scmp.ge.s32.totalorder %s686, %s644
                  %s688 = scalar_select %p687, 0, %s686
                  %s689 = smul.u32 %s688, 128
                  %s690 = smul.u32 %s688, 128
                  %s691 = scalar_lea.vmem %s548, %s689 [#allocation2]
                  %s692 = scalar_lea.vmem %s559, %s690
                $region71: #{tpu_custom_call.1} parent=65 // loop_footer
                  %s648 = sadd.s32 %s646, 1
                $region72: #{tpu_custom_call.1} parent=65 // loop_footer_branch
                  %645 = sbr.rel target = $region68
                $region73: #{tpu_custom_call.1} parent=65 // loop_exit
                  _
                %s693 = sshrl.u32 %s555, 4
                %s694 = sand.u32 %s555, 15
                %s695 = smul.u32 %s693, 16
                %s696 = smul.u32 8, %s695
                %s697 = scalar_lea.vmem %s548, %s696 [#allocation2]
                %s698 = smul.u32 8, %s695
                %s699 = scalar_lea.vmem %s559, %s698
                // While loop
                $region74: #{tpu_custom_call.1} parent=65 // loop_pre_header
                  _
                $region75: #{tpu_custom_call.1} parent=65 // loop_header
                  %s701 = sphi 0, %s703
                  %p702 = scmp.ge.s32.totalorder %s701, %s694
                  %s706 = sphi 0, %s713
                  %s707 = sphi %s697, %s716
                  %s708 = sphi %s699, %s717
                $region76: #{tpu_custom_call.1} parent=65 // loop_header_branch
                  %705 = sbr.rel (%p702) target = $region80
                $region77: #{tpu_custom_call.1} parent=65 // loop_body
                  %v709 = vld [vmem:[%s707] sm:$0xff]
                  %710 = vst [vmem:[%s708] sm:$0xff] %v709
                  %s711 = sadd.s32 1, %s706
                  %p712 = scmp.ge.s32.totalorder %s711, %s694
                  %s713 = scalar_select %p712, 0, %s711
                  %s714 = smul.u32 %s713, 8
                  %s715 = smul.u32 %s713, 8
                  %s716 = scalar_lea.vmem %s697, %s714 [#allocation2]
                  %s717 = scalar_lea.vmem %s699, %s715
                $region78: #{tpu_custom_call.1} parent=65 // loop_footer
                  %s703 = sadd.s32 %s701, 1
                $region79: #{tpu_custom_call.1} parent=65 // loop_footer_branch
                  %700 = sbr.rel target = $region75
                $region80: #{tpu_custom_call.1} parent=65 // loop_exit
                  _
              $region66: #{tpu_custom_call.1} parent=43 // pred_fallthru
                _
              // Predicated region
              $region81: #{tpu_custom_call.1} parent=43 // pred_check
                _
              $region82: #{tpu_custom_call.1} parent=43 // pred_check_branch
                %719 = sbr.rel target = $region84
              $region83: #{tpu_custom_call.1} parent=43 // pred_region
                _
              $region84: #{tpu_custom_call.1} parent=43 // pred_fallthru
                _
            $region44: #{tpu_custom_call.1} parent=39 // pred_fallthru
              _
            // Predicated region
            $region45: #{tpu_custom_call.1} parent=39 // pred_check
              _
            $region46: #{tpu_custom_call.1} parent=39 // pred_check_branch
              %566 = sbr.rel target = $region48
            $region47: #{tpu_custom_call.1} parent=39 // pred_region
              %s568 = sshrl.u32 %s555, 4
              // While loop
              $region49: #{tpu_custom_call.1} parent=47 // loop_pre_header
                _
              $region50: #{tpu_custom_call.1} parent=47 // loop_header
                %s570 = sphi 0, %s572
                %p571 = scmp.ge.s32.totalorder %s570, %s568
                %s575 = sphi 0, %s612
                %s576 = sphi %s548, %s615
                %s577 = sphi %s559, %s616
              $region51: #{tpu_custom_call.1} parent=47 // loop_header_branch
                %574 = sbr.rel (%p571) target = $region55
              $region52: #{tpu_custom_call.1} parent=47 // loop_body
                %v578 = vld [vmem:[%s576] sm:$0xff]
                %579 = vst [vmem:[%s577] sm:$0xff] %v578
                %v580 = vld [vmem:[%s576 + $0x8] sm:$0xff]
                %581 = vst [vmem:[%s577 + $0x8] sm:$0xff] %v580
                %v582 = vld [vmem:[%s576 + $0x10] sm:$0xff]
                %583 = vst [vmem:[%s577 + $0x10] sm:$0xff] %v582
                %v584 = vld [vmem:[%s576 + $0x18] sm:$0xff]
                %585 = vst [vmem:[%s577 + $0x18] sm:$0xff] %v584
                %v586 = vld [vmem:[%s576 + $0x20] sm:$0xff]
                %587 = vst [vmem:[%s577 + $0x20] sm:$0xff] %v586
                %v588 = vld [vmem:[%s576 + $0x28] sm:$0xff]
                %589 = vst [vmem:[%s577 + $0x28] sm:$0xff] %v588
                %v590 = vld [vmem:[%s576 + $0x30] sm:$0xff]
                %591 = vst [vmem:[%s577 + $0x30] sm:$0xff] %v590
                %v592 = vld [vmem:[%s576 + $0x38] sm:$0xff]
                %593 = vst [vmem:[%s577 + $0x38] sm:$0xff] %v592
                %v594 = vld [vmem:[%s576 + $0x40] sm:$0xff]
                %595 = vst [vmem:[%s577 + $0x40] sm:$0xff] %v594
                %v596 = vld [vmem:[%s576 + $0x48] sm:$0xff]
                %597 = vst [vmem:[%s577 + $0x48] sm:$0xff] %v596
                %v598 = vld [vmem:[%s576 + $0x50] sm:$0xff]
                %599 = vst [vmem:[%s577 + $0x50] sm:$0xff] %v598
                %v600 = vld [vmem:[%s576 + $0x58] sm:$0xff]
                %601 = vst [vmem:[%s577 + $0x58] sm:$0xff] %v600
                %v602 = vld [vmem:[%s576 + $0x60] sm:$0xff]
                %603 = vst [vmem:[%s577 + $0x60] sm:$0xff] %v602
                %v604 = vld [vmem:[%s576 + $0x68] sm:$0xff]
                %605 = vst [vmem:[%s577 + $0x68] sm:$0xff] %v604
                %v606 = vld [vmem:[%s576 + $0x70] sm:$0xff]
                %607 = vst [vmem:[%s577 + $0x70] sm:$0xff] %v606
                %v608 = vld [vmem:[%s576 + $0x78] sm:$0xff]
                %609 = vst [vmem:[%s577 + $0x78] sm:$0xff] %v608
                %s610 = sadd.s32 1, %s575
                %p611 = scmp.ge.s32.totalorder %s610, %s568
                %s612 = scalar_select %p611, 0, %s610
                %s613 = smul.u32 %s612, 128
                %s614 = smul.u32 %s612, 128
                %s615 = scalar_lea.vmem %s548, %s613 [#allocation2]
                %s616 = scalar_lea.vmem %s559, %s614
              $region53: #{tpu_custom_call.1} parent=47 // loop_footer
                %s572 = sadd.s32 %s570, 1
              $region54: #{tpu_custom_call.1} parent=47 // loop_footer_branch
                %569 = sbr.rel target = $region50
              $region55: #{tpu_custom_call.1} parent=47 // loop_exit
                _
              %s617 = sshrl.u32 %s555, 4
              %s618 = sand.u32 %s555, 15
              %s619 = smul.u32 %s617, 16
              %s620 = smul.u32 8, %s619
              %s621 = scalar_lea.vmem %s548, %s620 [#allocation2]
              %s622 = smul.u32 8, %s619
              %s623 = scalar_lea.vmem %s559, %s622
              // While loop
              $region56: #{tpu_custom_call.1} parent=47 // loop_pre_header
                _
              $region57: #{tpu_custom_call.1} parent=47 // loop_header
                %s625 = sphi 0, %s627
                %p626 = scmp.ge.s32.totalorder %s625, %s618
                %s630 = sphi 0, %s637
                %s631 = sphi %s621, %s640
                %s632 = sphi %s623, %s641
              $region58: #{tpu_custom_call.1} parent=47 // loop_header_branch
                %629 = sbr.rel (%p626) target = $region62
              $region59: #{tpu_custom_call.1} parent=47 // loop_body
                %v633 = vld [vmem:[%s631] sm:$0xff]
                %634 = vst [vmem:[%s632] sm:$0xff] %v633
                %s635 = sadd.s32 1, %s630
                %p636 = scmp.ge.s32.totalorder %s635, %s618
                %s637 = scalar_select %p636, 0, %s635
                %s638 = smul.u32 %s637, 8
                %s639 = smul.u32 %s637, 8
                %s640 = scalar_lea.vmem %s621, %s638 [#allocation2]
                %s641 = scalar_lea.vmem %s623, %s639
              $region60: #{tpu_custom_call.1} parent=47 // loop_footer
                %s627 = sadd.s32 %s625, 1
              $region61: #{tpu_custom_call.1} parent=47 // loop_footer_branch
                %624 = sbr.rel target = $region57
              $region62: #{tpu_custom_call.1} parent=47 // loop_exit
                _
            $region48: #{tpu_custom_call.1} parent=39 // pred_fallthru
              _
          $region40: #{tpu_custom_call.1} parent=35 // pred_fallthru
            _
          %720 = vnop
        $region36: #{tpu_custom_call.1} parent=31 // pred_fallthru
          _
      $region32: #{tpu_custom_call.1} parent=5 // pred_fallthru
        _
      %p721 = scmp.le.s32.totalorder 2, %s9
      // Predicated region
      $region85: #{tpu_custom_call.1} parent=5 // pred_check
        %p722 = pneg %p721
      $region86: #{tpu_custom_call.1} parent=5 // pred_check_branch
        %724 = sbr.rel (%p722) target = $region88
      $region87: #{tpu_custom_call.1} parent=5 // pred_region
        %s725 = ssub.s32 %s9, 2
        // Predicated region
        $region89: #{tpu_custom_call.1} parent=87 // pred_check
          %p726 = pneg %p111
        $region90: #{tpu_custom_call.1} parent=87 // pred_check_branch
          %728 = sbr.rel (%p726) target = $region92
        $region91: #{tpu_custom_call.1} parent=87 // pred_region
          %s729 = sand.u32 %s96, 1
          %s730 = sand.u32 %s96, 1
          %s731 = smul.addr %s730, 128
          %s732 = scalar_lea.vmem [#allocation2], %s731
        $region92: #{tpu_custom_call.1} parent=87 // pred_fallthru
          _
      $region88: #{tpu_custom_call.1} parent=5 // pred_fallthru
        _
    $region6: #{tpu_custom_call.1} parent=1 // loop_footer
      %s13 = sadd.s32 1, %s9
    $region7: #{tpu_custom_call.1} parent=1 // loop_footer_branch
      %8 = sbr.rel target = $region3
    $region8: #{tpu_custom_call.1} parent=1 // loop_exit
      _

</llo_original>
